<compile_context>
chip_gen: v5e
topology: v5e:2x2
jax: 0.10.0
libtpu: 0.0.40
codegen_flags: <defaults>
</compile_context>

<pallas_src>
import jax
import jax.numpy as jnp
from jax.experimental import pallas as pl
from jax.experimental.pallas import tpu as pltpu

# ----------------------------- small, module-consistent config -----------------------
B        = 2      # batch
C_IN     = 3      # image channels
PATCH    = 2      # stand-in for DINOv2 patch size 14
H_IMG    = 32     # -> 16x16 tokens (stand-in for tokenH=tokenW=46)
W_IMG    = 32
H_TOK    = H_IMG // PATCH
W_TOK    = W_IMG // PATCH
D_HID    = 8      # hidden size per intermediate layer (stand-in for 384 in vits14)
N_LAYERS = 4      # number of intermediate layers concatenated (1536 = 4*384 in the module)
C_CAT    = N_LAYERS * D_HID        # concatenated channels (stand-in for 1536)
NC       = 4      # number of segmentation classes
NC_PAD   = 128    # lane-dense padded class dim (output stores use full 128 lanes)
P_DIM    = C_IN * PATCH * PATCH    # flattened patch dim
TM       = 128    # token-row tile (sublane-aligned; at real sizes use 512-1024)


# ----------------------------------- Pallas kernel -----------------------------------
def dinov2_seg_kernel(tok_ref, wpatch_ref, whead_ref, bias_ref, out_ref):
    """All refs live in VMEM. One grid step processes TM token rows.

    tok_ref    : (TM, P_DIM)      flattened image patches (token rows)
    wpatch_ref : (P_DIM, D_HID)   patch-embedding projection (backbone stand-in)
    whead_ref  : (D_HID, NC_PAD)  folded {per-layer projections + concat + 1x1 conv}
    bias_ref   : (1, NC_PAD)      1x1 conv bias (zero-padded to 128 lanes)
    out_ref    : (TM, NC_PAD)     classifier logits per token (lane-dense store)
    """
    # backbone stand-in: patch embedding (MXU matmul, f32 accumulation)
    emb = jnp.dot(tok_ref[...], wpatch_ref[...], preferred_element_type=jnp.float32)
    # decode head: folded (layer projections -> concat -> Conv2d 1x1) == one matmul + bias
    out_ref[...] = (
        jnp.dot(emb, whead_ref[...], preferred_element_type=jnp.float32)
        + bias_ref[...]
    )


# ----------------------------------- host wrapper -------------------------------------
def dinov2_segmentation(x_nchw, w_patch, w_layers, w_conv, b_conv):
    """x_nchw: (B, C_IN, H_IMG, W_IMG) float32 -> (B, NC, H_TOK, W_TOK) float32."""
    Bn, C, H, W = x_nchw.shape
    assert (C, H, W) == (C_IN, H_IMG, W_IMG)

    # NCHW -> non-overlapping patches -> (M, C*p*p) token rows (matches Conv2d
    # patch-embed weight flattening order: channel, kh, kw).
    tok = x_nchw.reshape(Bn, C, H_TOK, PATCH, W_TOK, PATCH)
    tok = tok.transpose(0, 2, 4, 1, 3, 5).reshape(Bn * H_TOK * W_TOK, P_DIM)
    M = tok.shape[0]
    assert M % TM == 0, (M, TM)

    # Fold  concat_l(emb @ W_l) @ Wconv^T  ==  emb @ sum_l( W_l @ Wconv^T[l*D:(l+1)*D, :] )
    w_conv_r = w_conv.T.reshape(N_LAYERS, D_HID, NC)            # (L, D, NC)
    w_head = jnp.einsum("lde,len->dn", w_layers, w_conv_r)      # (D_HID, NC)

    # Pad the class dim to 128 lanes -> lane-dense (unmasked) output stores.
    w_head_pad = jnp.zeros((D_HID, NC_PAD), jnp.float32).at[:, :NC].set(w_head)
    bias_pad   = jnp.zeros((1, NC_PAD), jnp.float32).at[0, :NC].set(b_conv)

    cost = pl.CostEstimate(
        flops=2 * M * (P_DIM * D_HID + D_HID * NC_PAD),
        transcendentals=0,
        bytes_accessed=4 * (M * P_DIM + P_DIM * D_HID + D_HID * NC_PAD
                            + NC_PAD + M * NC_PAD),
    )

    out_tok = pl.pallas_call(
        dinov2_seg_kernel,
        out_shape=jax.ShapeDtypeStruct((M, NC_PAD), jnp.float32),
        grid=(M // TM,),
        in_specs=[
            pl.BlockSpec((TM, P_DIM), lambda i: (i, 0)),        # pipelined over M
            pl.BlockSpec((P_DIM, D_HID), lambda i: (0, 0)),     # resident weights
            pl.BlockSpec((D_HID, NC_PAD), lambda i: (0, 0)),
            pl.BlockSpec((1, NC_PAD), lambda i: (0, 0)),
        ],
        out_specs=pl.BlockSpec((TM, NC_PAD), lambda i: (i, 0)),
        compiler_params=pltpu.CompilerParams(
            dimension_semantics=("parallel",),     # M tiles independent -> megacore OK
            vmem_limit_bytes=32 * 1024 * 1024,     # explicit (v5e default is only 16 MiB)
        ),
        cost_estimate=cost,
    )(tok, w_patch, w_head_pad, bias_pad)

    # (M, NC_PAD) -> slice classes -> (B, H_TOK, W_TOK, NC) -> NCHW (Conv2d layout)
    out = out_tok[:, :NC].reshape(Bn, H_TOK, W_TOK, NC).transpose(0, 3, 1, 2)
    return out


# -------------------------- pure-JAX reference (unfolded, for sanity) ------------------
def reference(x_nchw, w_patch, w_layers, w_conv, b_conv):
    tok = x_nchw.reshape(B, C_IN, H_TOK, PATCH, W_TOK, PATCH)
    tok = tok.transpose(0, 2, 4, 1, 3, 5).reshape(-1, P_DIM)
    emb = tok @ w_patch
    cat = jnp.concatenate([emb @ w_layers[l] for l in range(N_LAYERS)], axis=-1)
    logits = cat @ w_conv.T + b_conv[None, :]
    return logits.reshape(B, H_TOK, W_TOK, NC).transpose(0, 3, 1, 2)


if __name__ == "__main__":
    key = jax.random.PRNGKey(0)
    kx, kp, kl, kc, kb = jax.random.split(key, 5)

    # deterministic synthetic parameters (shapes follow the module's __init__)
    x        = jax.random.normal(kx, (B, C_IN, H_IMG, W_IMG), dtype=jnp.float32)
    w_patch  = jax.random.normal(kp, (P_DIM, D_HID), dtype=jnp.float32) * 0.1
    w_layers = jax.random.normal(kl, (N_LAYERS, D_HID, D_HID), dtype=jnp.float32) * 0.1
    w_conv   = jax.random.normal(kc, (NC, C_CAT), dtype=jnp.float32) * 0.1   # Conv2d(1x1) weight
    b_conv   = jax.random.normal(kb, (NC,), dtype=jnp.float32) * 0.1         # Conv2d(1x1) bias

    out = dinov2_segmentation(x, w_patch, w_layers, w_conv, b_conv)
    out = jax.block_until_ready(out)

    ref = reference(x, w_patch, w_layers, w_conv, b_conv)
    assert out.shape == (B, NC, H_TOK, W_TOK), out.shape
    assert jnp.allclose(out, ref, atol=1e-4, rtol=1e-4), "mismatch vs reference"

    print("KERNEL_OK")
</pallas_src>

<mosaic_0001>
module attributes {stable_mosaic.version = 11 : i64} {
  func.func @dinov2_seg_kernel(%arg0: i32, %arg1: memref<128x12xf32, #tpu.memory_space<vmem>>, %arg2: memref<12x8xf32, #tpu.memory_space<vmem>>, %arg3: memref<8x128xf32, #tpu.memory_space<vmem>>, %arg4: memref<1x128xf32, #tpu.memory_space<vmem>>, %arg5: memref<128x128xf32, #tpu.memory_space<vmem>>) attributes {dimension_semantics = [#tpu.dimension_semantics<parallel>], iteration_bounds = array<i64: 4>, scalar_prefetch = 0 : i64, scratch_operands = 0 : i64, tpu.core_type = #tpu.core_type<tc>, window_params = [{transform_indices = @transform_0, window_bounds = array<i64: 128, 12>}, {pipeline_mode = #tpu.pipeline_mode<synchronous>, transform_indices = @transform_1, window_bounds = array<i64: 12, 8>}, {pipeline_mode = #tpu.pipeline_mode<synchronous>, transform_indices = @transform_2, window_bounds = array<i64: 8, 128>}, {pipeline_mode = #tpu.pipeline_mode<synchronous>, transform_indices = @transform_3, window_bounds = array<i64: 1, 128>}, {transform_indices = @transform_4, window_bounds = array<i64: 128, 128>}]} {
    %c0 = arith.constant 0 : index
    %c0_0 = arith.constant 0 : index
    %0 = vector.load %arg1[%c0, %c0_0] : memref<128x12xf32, #tpu.memory_space<vmem>>, vector<128x12xf32>
    %c0_1 = arith.constant 0 : index
    %c0_2 = arith.constant 0 : index
    %1 = vector.load %arg2[%c0_1, %c0_2] : memref<12x8xf32, #tpu.memory_space<vmem>>, vector<12x8xf32>
    %cst = arith.constant dense<0.000000e+00> : vector<128x8xf32>
    %2 = tpu.matmul %0, %1, %cst {dimension_numbers = #tpu.dot_dimension_numbers<[1], [0], [0], [1], [0, 0, 1, 1], [], []>} : vector<128x12xf32>, vector<12x8xf32>, vector<128x8xf32> -> vector<128x8xf32>
    %c0_3 = arith.constant 0 : index
    %c0_4 = arith.constant 0 : index
    %3 = vector.load %arg3[%c0_3, %c0_4] : memref<8x128xf32, #tpu.memory_space<vmem>>, vector<8x128xf32>
    %cst_5 = arith.constant dense<0.000000e+00> : vector<128x128xf32>
    %4 = tpu.matmul %2, %3, %cst_5 {dimension_numbers = #tpu.dot_dimension_numbers<[1], [0], [0], [1], [0, 0, 1, 1], [], []>} : vector<128x8xf32>, vector<8x128xf32>, vector<128x128xf32> -> vector<128x128xf32>
    %c0_6 = arith.constant 0 : index
    %c0_7 = arith.constant 0 : index
    %5 = vector.load %arg4[%c0_6, %c0_7] : memref<1x128xf32, #tpu.memory_space<vmem>>, vector<1x128xf32>
    %6 = vector.broadcast %5 : vector<1x128xf32> to vector<128x128xf32>
    %7 = arith.addf %4, %6 : vector<128x128xf32>
    %c0_8 = arith.constant 0 : index
    %c0_9 = arith.constant 0 : index
    %8 = vector.load %arg5[%c0_8, %c0_9] : memref<128x128xf32, #tpu.memory_space<vmem>>, vector<128x128xf32>
    tpu.vector_store %arg5[%c0_8, %c0_9], %7 {strides = array<i32>} : memref<128x128xf32, #tpu.memory_space<vmem>>, vector<128x128xf32>,
    return
  }
  func.func @transform_0(%arg0: i32) -> (i32, i32) {
    %c0_i32 = arith.constant 0 : i32
    %c0_i32_0 = arith.constant 0 : i32
    return %arg0, %c0_i32 : i32, i32
  }
  func.func @transform_1(%arg0: i32) -> (i32, i32) {
    %c0_i32 = arith.constant 0 : i32
    %c0_i32_0 = arith.constant 0 : i32
    %c0_i32_1 = arith.constant 0 : i32
    return %c0_i32, %c0_i32_0 : i32, i32
  }
  func.func @transform_2(%arg0: i32) -> (i32, i32) {
    %c0_i32 = arith.constant 0 : i32
    %c0_i32_0 = arith.constant 0 : i32
    %c0_i32_1 = arith.constant 0 : i32
    return %c0_i32, %c0_i32_0 : i32, i32
  }
  func.func @transform_3(%arg0: i32) -> (i32, i32) {
    %c0_i32 = arith.constant 0 : i32
    %c0_i32_0 = arith.constant 0 : i32
    %c0_i32_1 = arith.constant 0 : i32
    return %c0_i32, %c0_i32_0 : i32, i32
  }
  func.func @transform_4(%arg0: i32) -> (i32, i32) {
    %c0_i32 = arith.constant 0 : i32
    %c0_i32_0 = arith.constant 0 : i32
    return %arg0, %c0_i32 : i32, i32
  }
}

</mosaic_0001>

<llo_original>
// kernel: tpu_custom_call.1
$region0: #{tpu_custom_call.1}
  #allocation0 [shape = 'u32[]', space=smem, size = 0x4, offset = 0x4, fixed_abs, tag = 'smem constant byte address 0x4 - core index']
  #allocation1 [shape = 'u32[72,128]{1,0:T(1,128)}', space=vmem, size = 0x9000, scoped, tag = 'internal scratch']
  %s0 = inlined_call_operand.vmem [shape: f32[512,12], index: 0, kind: input, shape index: {}]
  %s1 = inlined_call_operand.vmem [shape: f32[12,8], index: 1, kind: input, shape index: {}]
  %s2 = inlined_call_operand.vmem [shape: f32[8,128], index: 2, kind: input, shape index: {}]
  %s3 = inlined_call_operand.vmem [shape: f32[1,128], index: 3, kind: input, shape index: {}]
  %s4 = inlined_call_operand.hbm [shape: f32[512,128], index: 4, kind: output, shape index: {}]
  %s5 = sld [smem:[#allocation0]]
  $region49: #{tpu_custom_call.1} parent=0
    _
  %s7 = ssub.s32 1, %s5
  %s8 = scalar_select 0, %s7, %s5
  $region1: #{tpu_custom_call.1} parent=0
    #allocation2 [shape = 'u8[131072]{0}', space=vmem, size = 0x20000, scoped, tag = 'output window, operand 0']
    #allocation3 [shape = 's32[2]{0}', space=sflag, size = 0x8, scoped, tag = 'scoped memory for tpu_custom_call.1']
    %9 = vsyncpa [#allocation3], 0
    %s10 = scalar_lea.sflag [#allocation3], 1
    %11 = vsyncpa %s10, 0
    loop: start=0, step=1, limit=6
    $region2: #{tpu_custom_call.1} parent=1 // loop_pre_header
      _
    $region3: #{tpu_custom_call.1} parent=1 // loop_header
      %s13 = sphi 0, %s17
      %p14 = scmp.ge.s32.totalorder %s13, 6
      %s23 = sphi 0, %s25
      %s26 = sphi 0, %s23
      %s27 = sphi 0, %s26
      %s43 = sphi 0, %s27
      %s47 = sphi 0, %s47
      %s49 = sphi 0, %s47
      %s50 = sphi 0, %s49
      %s64 = sphi 0, %s50
      %s68 = sphi 0, %s68
      %s70 = sphi 0, %s68
      %s71 = sphi 0, %s70
      %s85 = sphi 0, %s71
      %s89 = sphi 0, %s89
      %s91 = sphi 0, %s89
      %s92 = sphi 0, %s91
      %s106 = sphi 0, %s92
      %s112 = sphi 0, %s114
      %s115 = sphi 0, %s112
      %s116 = sphi 0, %s115
      %s132 = sphi 0, %s116
    $region4: #{tpu_custom_call.1} parent=1 // loop_header_branch
      %16 = sbr.rel (%p14) target = $region8
    $region5: #{tpu_custom_call.1} parent=1 // loop_body
      %s18 = ssub.s32 %s13, 1
      %s19 = ssub.s32 %s13, 2
      %s20 = sadd.s32 %s13, 1
      %s21 = ssub.s32 %s13, %s20
      %p22 = scmp.eq.s32.totalorder %s21, 0
      %s24 = sadd.s32 %s23, 1
      %s25 = scalar_select %p22, %s23, %s24
      %p28 = pneg %p22
      %p29 = scmp.eq.s32.totalorder %s13, 3
      %p30 = por %p28, %p29
      %p31 = scmp.ne.s32.totalorder %s23, %s26
      %p32 = scmp.eq.s32.totalorder %s13, 0
      %p33 = por %p31, %p32
      %p34 = scmp.ne.s32.totalorder %s23, %s26
      %p35 = scmp.eq.s32.totalorder %s18, 3
      %p36 = por %p34, %p35
      %p37 = scmp.ne.s32.totalorder %s26, %s27
      %p38 = scmp.eq.s32.totalorder %s18, 0
      %p39 = por %p37, %p38
      %p40 = scmp.ne.s32.totalorder %s26, %s27
      %p41 = scmp.eq.s32.totalorder %s19, 3
      %p42 = por %p40, %p41
      %p44 = scmp.ne.s32.totalorder %s27, %s43
      %p45 = scmp.eq.s32.totalorder %s19, 0
      %p46 = por %p44, %p45
      %s48 = sadd.s32 %s47, 1
      %p51 = scmp.eq.s32.totalorder %s13, 3
      %p52 = scmp.ne.s32.totalorder %s47, %s49
      %p53 = scmp.eq.s32.totalorder %s13, 0
      %p54 = por %p52, %p53
      %p55 = scmp.ne.s32.totalorder %s47, %s49
      %p56 = scmp.eq.s32.totalorder %s18, 3
      %p57 = por %p55, %p56
      %p58 = scmp.ne.s32.totalorder %s49, %s50
      %p59 = scmp.eq.s32.totalorder %s18, 0
      %p60 = por %p58, %p59
      %p61 = scmp.ne.s32.totalorder %s49, %s50
      %p62 = scmp.eq.s32.totalorder %s19, 3
      %p63 = por %p61, %p62
      %p65 = scmp.ne.s32.totalorder %s50, %s64
      %p66 = scmp.eq.s32.totalorder %s19, 0
      %p67 = por %p65, %p66
      %s69 = sadd.s32 %s68, 1
      %p72 = scmp.eq.s32.totalorder %s13, 3
      %p73 = scmp.ne.s32.totalorder %s68, %s70
      %p74 = scmp.eq.s32.totalorder %s13, 0
      %p75 = por %p73, %p74
      %p76 = scmp.ne.s32.totalorder %s68, %s70
      %p77 = scmp.eq.s32.totalorder %s18, 3
      %p78 = por %p76, %p77
      %p79 = scmp.ne.s32.totalorder %s70, %s71
      %p80 = scmp.eq.s32.totalorder %s18, 0
      %p81 = por %p79, %p80
      %p82 = scmp.ne.s32.totalorder %s70, %s71
      %p83 = scmp.eq.s32.totalorder %s19, 3
      %p84 = por %p82, %p83
      %p86 = scmp.ne.s32.totalorder %s71, %s85
      %p87 = scmp.eq.s32.totalorder %s19, 0
      %p88 = por %p86, %p87
      %s90 = sadd.s32 %s89, 1
      %p93 = scmp.eq.s32.totalorder %s13, 3
      %p94 = scmp.ne.s32.totalorder %s89, %s91
      %p95 = scmp.eq.s32.totalorder %s13, 0
      %p96 = por %p94, %p95
      %p97 = scmp.ne.s32.totalorder %s89, %s91
      %p98 = scmp.eq.s32.totalorder %s18, 3
      %p99 = por %p97, %p98
      %p100 = scmp.ne.s32.totalorder %s91, %s92
      %p101 = scmp.eq.s32.totalorder %s18, 0
      %p102 = por %p100, %p101
      %p103 = scmp.ne.s32.totalorder %s91, %s92
      %p104 = scmp.eq.s32.totalorder %s19, 3
      %p105 = por %p103, %p104
      %p107 = scmp.ne.s32.totalorder %s92, %s106
      %p108 = scmp.eq.s32.totalorder %s19, 0
      %p109 = por %p107, %p108
      %s110 = ssub.s32 %s13, %s20
      %p111 = scmp.eq.s32.totalorder %s110, 0
      %s113 = sadd.s32 %s112, 1
      %s114 = scalar_select %p111, %s112, %s113
      %p117 = pneg %p111
      %p118 = scmp.eq.s32.totalorder %s13, 3
      %p119 = por %p117, %p118
      %p120 = scmp.ne.s32.totalorder %s112, %s115
      %p121 = scmp.eq.s32.totalorder %s13, 0
      %p122 = por %p120, %p121
      %p123 = scmp.ne.s32.totalorder %s112, %s115
      %p124 = scmp.eq.s32.totalorder %s18, 3
      %p125 = por %p123, %p124
      %p126 = scmp.ne.s32.totalorder %s115, %s116
      %p127 = scmp.eq.s32.totalorder %s18, 0
      %p128 = por %p126, %p127
      %p129 = scmp.ne.s32.totalorder %s115, %s116
      %p130 = scmp.eq.s32.totalorder %s19, 3
      %p131 = por %p129, %p130
      %p133 = scmp.ne.s32.totalorder %s116, %s132
      %p134 = scmp.eq.s32.totalorder %s19, 0
      %p135 = por %p133, %p134
      %p136 = scmp.le.s32.totalorder 1, %s13
      %p137 = scmp.lt.s32.totalorder %s13, 5
      %p138 = pnand %p136, %p137
      %p139 = pneg %p138
      // Predicated region
      $region9: #{tpu_custom_call.1} parent=5 // pred_check
        _
      $region10: #{tpu_custom_call.1} parent=5 // pred_check_branch
        %141 = sbr.rel (%p138) target = $region12
      $region11: #{tpu_custom_call.1} parent=5 // pred_region
        %s142 = ssub.s32 %s13, 1
        // Predicated region
        $region13: #{tpu_custom_call.1} parent=11 // pred_check
          %p143 = pneg %p60
        $region14: #{tpu_custom_call.1} parent=11 // pred_check_branch
          %145 = sbr.rel (%p143) target = $region16
        $region15: #{tpu_custom_call.1} parent=11 // pred_region
          _
        $region16: #{tpu_custom_call.1} parent=11 // pred_fallthru
          _
        // Predicated region
        $region17: #{tpu_custom_call.1} parent=11 // pred_check
          %p146 = pneg %p81
        $region18: #{tpu_custom_call.1} parent=11 // pred_check_branch
          %148 = sbr.rel (%p146) target = $region20
        $region19: #{tpu_custom_call.1} parent=11 // pred_region
          _
        $region20: #{tpu_custom_call.1} parent=11 // pred_fallthru
          _
        // Predicated region
        $region21: #{tpu_custom_call.1} parent=11 // pred_check
          %p149 = pneg %p102
        $region22: #{tpu_custom_call.1} parent=11 // pred_check_branch
          %151 = sbr.rel (%p149) target = $region24
        $region23: #{tpu_custom_call.1} parent=11 // pred_region
          _
        $region24: #{tpu_custom_call.1} parent=11 // pred_fallthru
          _
      $region12: #{tpu_custom_call.1} parent=5 // pred_fallthru
        _
      %p152 = scmp.lt.s32.totalorder %s13, 4
      // Predicated region
      $region25: #{tpu_custom_call.1} parent=5 // pred_check
        %p153 = pneg %p152
      $region26: #{tpu_custom_call.1} parent=5 // pred_check_branch
        %155 = sbr.rel (%p153) target = $region28
      $region27: #{tpu_custom_call.1} parent=5 // pred_region
        // Predicated region
        $region29: #{tpu_custom_call.1} parent=27 // pred_check
          %p156 = pneg %p33
        $region30: #{tpu_custom_call.1} parent=27 // pred_check_branch
          %158 = sbr.rel (%p156) target = $region32
        $region31: #{tpu_custom_call.1} parent=27 // pred_region
          %s159 = smul.u32 16, %s13
          %p160 = scmp.lt.s32.totalorder %s159, 63
          %s161 = scalar_select %p160, %s159, 63
          %s162 = smul.addr %s161, 8
          %s163 = scalar_lea.vmem %s0, %s162
          %s164 = smul.u32 16, %s13
        $region32: #{tpu_custom_call.1} parent=27 // pred_fallthru
          _
      $region28: #{tpu_custom_call.1} parent=5 // pred_fallthru
        _
      %p165 = scmp.le.s32.totalorder 1, %s13
      %p166 = scmp.lt.s32.totalorder %s13, 5
      %p167 = pnand %p165, %p166
      %p168 = pneg %p167
      // Predicated region
      $region33: #{tpu_custom_call.1} parent=5 // pred_check
        _
      $region34: #{tpu_custom_call.1} parent=5 // pred_check_branch
        %170 = sbr.rel (%p167) target = $region36
      $region35: #{tpu_custom_call.1} parent=5 // pred_region
        %s171 = ssub.s32 %s13, 1
        %s172 = smul.u32 16, %s18
        %p173 = scmp.lt.s32.totalorder %s172, 63
        %s174 = scalar_select %p173, %s172, 63
        %s175 = smul.addr %s174, 8
        %s176 = scalar_lea.vmem %s0, %s175
        %p177 = pneg %p39
        %p178 = pneg %p36
        %p179 = pneg %p60
        %p180 = pneg %p57
        %p181 = pneg %p81
        %p182 = pneg %p78
        %p183 = pneg %p102
        %p184 = pneg %p99
        %p185 = pneg %p128
        %p186 = pneg %p125
        %s187 = sand.u32 %s115, 1
        %s188 = scalar_lea.sflag [#allocation3], %s187
        %s189 = sand.u32 %s115, 1
        %s190 = smul.addr %s189, 128
        %s191 = scalar_lea.vmem [#allocation2], %s190
        %s192 = smul.u32 16, %s18
        %p193 = scmp.lt.s32.totalorder %s192, 63
        %s194 = scalar_select %p193, %s192, 63
        %s195 = smul.addr %s194, 8
        %s196 = scalar_lea.vmem %s0, %s195
        %s197 = smul.u32 16, %s18
        %s198 = smul.u32 16, %s18
        %v199 = vld [vmem:[%s196] sm:$0xff]
        %v200 = vld [vmem:[%s196 + $0x8] sm:$0xff]
        %v201 = vld [vmem:[%s196 + $0x10] sm:$0xff]
        %v202 = vld [vmem:[%s196 + $0x18] sm:$0xff]
        %v203 = vld [vmem:[%s196 + $0x20] sm:$0xff]
        %v204 = vld [vmem:[%s196 + $0x28] sm:$0xff]
        %v205 = vld [vmem:[%s196 + $0x30] sm:$0xff]
        %v206 = vld [vmem:[%s196 + $0x38] sm:$0xff]
        %v207 = vld [vmem:[%s196 + $0x40] sm:$0xff]
        %v208 = vld [vmem:[%s196 + $0x48] sm:$0xff]
        %v209 = vld [vmem:[%s196 + $0x50] sm:$0xff]
        %v210 = vld [vmem:[%s196 + $0x58] sm:$0xff]
        %v211 = vld [vmem:[%s196 + $0x60] sm:$0xff]
        %v212 = vld [vmem:[%s196 + $0x68] sm:$0xff]
        %v213 = vld [vmem:[%s196 + $0x70] sm:$0xff]
        %v214 = vld [vmem:[%s196 + $0x78] sm:$0xff]
        %v215 = vld [vmem:[%s1] sm:$0xff]
        %v216 = vld [vmem:[%s1 + $0x8] sm:$0xf]
        %vm217 = vcmask 97280
        %v219 = vsel %vm217, %v199, 0
        %v222 = vsel %vm217, %v200, 0
        %v225 = vsel %vm217, %v201, 0
        %v228 = vsel %vm217, %v202, 0
        %v231 = vsel %vm217, %v203, 0
        %v234 = vsel %vm217, %v204, 0
        %v237 = vsel %vm217, %v205, 0
        %v240 = vsel %vm217, %v206, 0
        %v243 = vsel %vm217, %v207, 0
        %v246 = vsel %vm217, %v208, 0
        %v249 = vsel %vm217, %v209, 0
        %v252 = vsel %vm217, %v210, 0
        %v255 = vsel %vm217, %v211, 0
        %v258 = vsel %vm217, %v212, 0
        %v261 = vsel %vm217, %v213, 0
        %v264 = vsel %vm217, %v214, 0
        %vm266 = vcmask 1043456
        %v268 = vsel %vm266, %v216, 0
        %270 = vmatpush.msra.mxu0 0.0
        %271 = vmatpush.msra.mxu0 0.0
        %272 = vmatpush.msra.mxu0 0.0
        %273 = vmatpush.msra.mxu0 0.0
        %274 = vmatpush.msra.mxu0 0.0
        %275 = vmatpush.msra.mxu0 0.0
        %276 = vmatpush.msra.mxu0 0.0
        %277 = vmatpush.msra.mxu0 0.0
        %278 = vmatpush.msra.mxu0 0.0
        %279 = vmatpush.msra.mxu0 0.0
        %280 = vmatpush.msra.mxu0 0.0
        %281 = vmatpush.msra.mxu0 0.0
        %282 = vmatpush.msra.mxu0 0.0
        %283 = vmatpush.msra.mxu0 0.0
        %284 = vmatpush.msra.mxu0 %v268
        %285 = vmatpush.msra.mxu0 %v215
        %286 = vmatmul.f32.gmra.mxu0 %v219
        %v287 = vpop.f32.mrf.mxu0
        %v288 = vadd.f32 0.0, %v287
        %289 = vmatmul.f32.gmra.mxu0 %v222
        %v290 = vpop.f32.mrf.mxu0
        %v291 = vadd.f32 0.0, %v290
        %292 = vmatmul.f32.gmra.mxu0 %v225
        %v293 = vpop.f32.mrf.mxu0
        %v294 = vadd.f32 0.0, %v293
        %295 = vmatmul.f32.gmra.mxu0 %v228
        %v296 = vpop.f32.mrf.mxu0
        %v297 = vadd.f32 0.0, %v296
        %298 = vmatmul.f32.gmra.mxu0 %v231
        %v299 = vpop.f32.mrf.mxu0
        %v300 = vadd.f32 0.0, %v299
        %301 = vmatmul.f32.gmra.mxu0 %v234
        %v302 = vpop.f32.mrf.mxu0
        %v303 = vadd.f32 0.0, %v302
        %304 = vmatmul.f32.gmra.mxu0 %v237
        %v305 = vpop.f32.mrf.mxu0
        %v306 = vadd.f32 0.0, %v305
        %307 = vmatmul.f32.gmra.mxu0 %v240
        %v308 = vpop.f32.mrf.mxu0
        %v309 = vadd.f32 0.0, %v308
        %310 = vmatmul.f32.gmra.mxu0 %v243
        %v311 = vpop.f32.mrf.mxu0
        %v312 = vadd.f32 0.0, %v311
        %313 = vmatmul.f32.gmra.mxu0 %v246
        %v314 = vpop.f32.mrf.mxu0
        %v315 = vadd.f32 0.0, %v314
        %316 = vmatmul.f32.gmra.mxu0 %v249
        %v317 = vpop.f32.mrf.mxu0
        %v318 = vadd.f32 0.0, %v317
        %319 = vmatmul.f32.gmra.mxu0 %v252
        %v320 = vpop.f32.mrf.mxu0
        %v321 = vadd.f32 0.0, %v320
        %322 = vmatmul.f32.gmra.mxu0 %v255
        %v323 = vpop.f32.mrf.mxu0
        %v324 = vadd.f32 0.0, %v323
        %325 = vmatmul.f32.gmra.mxu0 %v258
        %v326 = vpop.f32.mrf.mxu0
        %v327 = vadd.f32 0.0, %v326
        %328 = vmatmul.f32.gmra.mxu0 %v261
        %v329 = vpop.f32.mrf.mxu0
        %v330 = vadd.f32 0.0, %v329
        %331 = vmatmul.f32.gmra.mxu0 %v264
        %v332 = vpop.f32.mrf.mxu0
        %v333 = vadd.f32 0.0, %v332
        %334 = vdwg.mxu0
        %v335 = vld [vmem:[%s2] sm:$0xff]
        %v336 = vld [vmem:[%s3] sm:$0x1]
        %v338 = vperm.slane %v336, 0
        %vm340 = vcmask 64512
        %v342 = vsel %vm340, %v288, 0
        %v345 = vsel %vm340, %v291, 0
        %v348 = vsel %vm340, %v294, 0
        %v351 = vsel %vm340, %v297, 0
        %v354 = vsel %vm340, %v300, 0
        %v357 = vsel %vm340, %v303, 0
        %v360 = vsel %vm340, %v306, 0
        %v363 = vsel %vm340, %v309, 0
        %v366 = vsel %vm340, %v312, 0
        %v369 = vsel %vm340, %v315, 0
        %v372 = vsel %vm340, %v318, 0
        %v375 = vsel %vm340, %v321, 0
        %v378 = vsel %vm340, %v324, 0
        %v381 = vsel %vm340, %v327, 0
        %v384 = vsel %vm340, %v330, 0
        %v387 = vsel %vm340, %v333, 0
        %389 = vmatpush.msra.mxu0 0.0
        %390 = vmatpush.msra.mxu0 0.0
        %391 = vmatpush.msra.mxu0 0.0
        %392 = vmatpush.msra.mxu0 0.0
        %393 = vmatpush.msra.mxu0 0.0
        %394 = vmatpush.msra.mxu0 0.0
        %395 = vmatpush.msra.mxu0 0.0
        %396 = vmatpush.msra.mxu0 0.0
        %397 = vmatpush.msra.mxu0 0.0
        %398 = vmatpush.msra.mxu0 0.0
        %399 = vmatpush.msra.mxu0 0.0
        %400 = vmatpush.msra.mxu0 0.0
        %401 = vmatpush.msra.mxu0 0.0
        %402 = vmatpush.msra.mxu0 0.0
        %403 = vmatpush.msra.mxu0 0.0
        %404 = vmatpush.msra.mxu0 %v335
        %405 = vmatmul.f32.gmra.mxu0 %v342
        %v406 = vpop.f32.mrf.mxu0
        %v407 = vadd.f32 %v338, %v406
        %408 = vmatmul.f32.gmra.mxu0 %v345
        %v409 = vpop.f32.mrf.mxu0
        %v410 = vadd.f32 %v338, %v409
        %411 = vmatmul.f32.gmra.mxu0 %v348
        %v412 = vpop.f32.mrf.mxu0
        %v413 = vadd.f32 %v338, %v412
        %414 = vmatmul.f32.gmra.mxu0 %v351
        %v415 = vpop.f32.mrf.mxu0
        %v416 = vadd.f32 %v338, %v415
        %417 = vmatmul.f32.gmra.mxu0 %v354
        %v418 = vpop.f32.mrf.mxu0
        %v419 = vadd.f32 %v338, %v418
        %420 = vmatmul.f32.gmra.mxu0 %v357
        %v421 = vpop.f32.mrf.mxu0
        %v422 = vadd.f32 %v338, %v421
        %423 = vmatmul.f32.gmra.mxu0 %v360
        %v424 = vpop.f32.mrf.mxu0
        %v425 = vadd.f32 %v338, %v424
        %426 = vmatmul.f32.gmra.mxu0 %v363
        %v427 = vpop.f32.mrf.mxu0
        %v428 = vadd.f32 %v338, %v427
        %429 = vmatmul.f32.gmra.mxu0 %v366
        %v430 = vpop.f32.mrf.mxu0
        %v431 = vadd.f32 %v338, %v430
        %432 = vmatmul.f32.gmra.mxu0 %v369
        %v433 = vpop.f32.mrf.mxu0
        %v434 = vadd.f32 %v338, %v433
        %435 = vmatmul.f32.gmra.mxu0 %v372
        %v436 = vpop.f32.mrf.mxu0
        %v437 = vadd.f32 %v338, %v436
        %438 = vmatmul.f32.gmra.mxu0 %v375
        %v439 = vpop.f32.mrf.mxu0
        %v440 = vadd.f32 %v338, %v439
        %441 = vmatmul.f32.gmra.mxu0 %v378
        %v442 = vpop.f32.mrf.mxu0
        %v443 = vadd.f32 %v338, %v442
        %444 = vmatmul.f32.gmra.mxu0 %v381
        %v445 = vpop.f32.mrf.mxu0
        %v446 = vadd.f32 %v338, %v445
        %447 = vmatmul.f32.gmra.mxu0 %v384
        %v448 = vpop.f32.mrf.mxu0
        %v449 = vadd.f32 %v338, %v448
        %450 = vmatmul.f32.gmra.mxu0 %v387
        %v451 = vpop.f32.mrf.mxu0
        %v452 = vadd.f32 %v338, %v451
        %453 = vdwg.mxu0
        %454 = vst [vmem:[%s191] sm:$0xff] %v407
        %455 = vst [vmem:[%s191 + $0x8] sm:$0xff] %v410
        %456 = vst [vmem:[%s191 + $0x10] sm:$0xff] %v413
        %457 = vst [vmem:[%s191 + $0x18] sm:$0xff] %v416
        %458 = vst [vmem:[%s191 + $0x20] sm:$0xff] %v419
        %459 = vst [vmem:[%s191 + $0x28] sm:$0xff] %v422
        %460 = vst [vmem:[%s191 + $0x30] sm:$0xff] %v425
        %461 = vst [vmem:[%s191 + $0x38] sm:$0xff] %v428
        %462 = vst [vmem:[%s191 + $0x40] sm:$0xff] %v431
        %463 = vst [vmem:[%s191 + $0x48] sm:$0xff] %v434
        %464 = vst [vmem:[%s191 + $0x50] sm:$0xff] %v437
        %465 = vst [vmem:[%s191 + $0x58] sm:$0xff] %v440
        %466 = vst [vmem:[%s191 + $0x60] sm:$0xff] %v443
        %467 = vst [vmem:[%s191 + $0x68] sm:$0xff] %v446
        %468 = vst [vmem:[%s191 + $0x70] sm:$0xff] %v449
        %469 = vst [vmem:[%s191 + $0x78] sm:$0xff] %v452
        %s470 = sand.u32 %s115, 1
        %s471 = scalar_lea.sflag [#allocation3], %s470
        %s472 = sand.u32 %s115, 1
        %s473 = smul.addr %s472, 128
        %s474 = scalar_lea.vmem [#allocation2], %s473
        // Predicated region
        $region37: #{tpu_custom_call.1} parent=35 // pred_check
          %p475 = pneg %p125
        $region38: #{tpu_custom_call.1} parent=35 // pred_check_branch
          %477 = sbr.rel (%p475) target = $region40
        $region39: #{tpu_custom_call.1} parent=35 // pred_region
          %s478 = smul.u32 16, %s18
          %480 = vsyncadd %s471, 0
          %s481 = smul.addr %s478, 8
          %s482 = scalar_lea.hbm %s4, %s481
          %s483 = sshll.u32 %s474, 4
          %s484 = int_to_ptr.vmem [resolvable:$true] %s483
          %s485 = sshll.u32 %s482, 4
          %s486 = int_to_ptr.hbm [resolvable:$true] %s485
          %491 = dma.vmem_to_hbm [thread:$0]  %s484, 2048, %s486, %s471, 128, 128, 8
        $region40: #{tpu_custom_call.1} parent=35 // pred_fallthru
          _
      $region36: #{tpu_custom_call.1} parent=5 // pred_fallthru
        _
      %p492 = scmp.le.s32.totalorder 2, %s13
      // Predicated region
      $region41: #{tpu_custom_call.1} parent=5 // pred_check
        %p493 = pneg %p492
      $region42: #{tpu_custom_call.1} parent=5 // pred_check_branch
        %495 = sbr.rel (%p493) target = $region44
      $region43: #{tpu_custom_call.1} parent=5 // pred_region
        %s496 = ssub.s32 %s13, 2
        // Predicated region
        $region45: #{tpu_custom_call.1} parent=43 // pred_check
          %p497 = pneg %p131
        $region46: #{tpu_custom_call.1} parent=43 // pred_check_branch
          %499 = sbr.rel (%p497) target = $region48
        $region47: #{tpu_custom_call.1} parent=43 // pred_region
          %s500 = sand.u32 %s116, 1
          %s501 = scalar_lea.sflag [#allocation3], %s500
          %s502 = sand.u32 %s116, 1
          %s503 = smul.addr %s502, 128
          %s504 = scalar_lea.vmem [#allocation2], %s503
          %506 = dma.done %s501, 2048
        $region48: #{tpu_custom_call.1} parent=43 // pred_fallthru
          _
      $region44: #{tpu_custom_call.1} parent=5 // pred_fallthru
        _
    $region6: #{tpu_custom_call.1} parent=1 // loop_footer
      %s17 = sadd.s32 1, %s13
    $region7: #{tpu_custom_call.1} parent=1 // loop_footer_branch
      %12 = sbr.rel target = $region3
    $region8: #{tpu_custom_call.1} parent=1 // loop_exit
      _
    %507 = vsyncpa [#allocation3], 1
    %s508 = scalar_lea.sflag [#allocation3], 1
    %509 = vsyncpa %s508, 1

</llo_original>
